<compile_context>
chip_gen: v7x
topology: tpu7x:2x2x1
jax: 0.10.0
libtpu: 0.0.40
codegen_flags: <defaults>
</compile_context>

<pallas_src>
import jax
import jax.numpy as jnp
from jax.experimental import pallas as pl
from jax.experimental.pallas import tpu as pltpu

_LANE = 128


def _round_up(x, m):
    return ((x + m - 1) // m) * m


def _post_layers_kernel(x_ref, *refs):
    """Fused Linear chain: h = (((x @ W0 + b0) @ W1 + b1) ...) with f32 accumulation."""
    out_ref = refs[-1]
    wb_refs = refs[:-1]
    n_layers = len(wb_refs) // 2

    h = x_ref[...]                               # [tm, K0], activation dtype
    for i in range(n_layers):
        w = wb_refs[2 * i][...]                  # [Kp_i, Np_i], bf16 (MXU fast path)
        b = wb_refs[2 * i + 1][...]              # [1,  Np_i], f32
        acc = jnp.dot(h.astype(w.dtype), w, preferred_element_type=jnp.float32)
        h = acc + b                              # f32 intermediate stays in vregs/VMEM
    out_ref[...] = h.astype(out_ref.dtype)


def post_layers_forward(x, params, n_out=None, *, tm=None):
    """Fused PostLayers forward.

    x:      [B, K0] activations (f32 or bf16; output dtype follows x).
    params: list of (w_t [Kp_i, Np_i] bf16, b [1, Np_i] f32) from prepare_params;
            Np_i are 128-padded and Kp_0 must equal K0.
    n_out:  logical final width; padded result is sliced back to it.
    """
    B, K0 = x.shape
    n_layers = len(params)
    assert n_layers >= 1
    assert params[0][0].shape[0] == K0, "first-layer in-dim must match x width"

    padded_widths = [w.shape[1] for (w, _) in params]
    n_out_pad = padded_widths[-1]
    max_width = max(padded_widths)
    act_bytes = x.dtype.itemsize
    weight_bytes = sum(w.size * w.dtype.itemsize + b.size * b.dtype.itemsize
                       for (w, b) in params)

    # ---- batch tile --------------------------------------------------------
    if tm is None:
        tm = min(1024, B)                      # fill MXU M, amortize per-step overhead
        if B >= 64:
            tm = min(tm, pl.cdiv(B, 2))        # >= 2 grid steps: both v7x TCs get work
        # Fit double-buffered x/out tiles + f32 intermediates + resident weights
        # into a conservative VMEM budget.
        budget = 40 * (1 << 20) - weight_bytes
        per_row = 2 * (K0 + n_out_pad) * act_bytes + 2 * max_width * 4
        tm = min(tm, max(8, budget // max(per_row, 1)))
    if tm < B:
        tm = max(8, (tm // 8) * 8)             # sublane-aligned tiles (unmasked ops)
    else:
        tm = B                                 # whole-batch block (full-dim is legal)

    grid = (pl.cdiv(B, tm),)

    # ---- specs -------------------------------------------------------------
    in_specs = [pl.BlockSpec((tm, K0), lambda i: (i, 0))]
    flat_inputs = [x]
    for (w_t, b2) in params:
        Kp, Np = w_t.shape
        # Constant index_map -> VMEM-resident; single-buffered (double-buffering
        # a block that never changes only doubles its footprint).
        in_specs.append(pl.BlockSpec((Kp, Np), lambda i: (0, 0),
                                     pipeline_mode=pl.Buffered(1)))
        in_specs.append(pl.BlockSpec((1, Np), lambda i: (0, 0),
                                     pipeline_mode=pl.Buffered(1)))
        flat_inputs += [w_t, b2]

    out_specs = pl.BlockSpec((tm, n_out_pad), lambda i: (i, 0))  # lane-dense store

    # ---- VMEM limit & cost hint --------------------------------------------
    vmem_needed = (weight_bytes
                   + 2 * tm * K0 * act_bytes
                   + 2 * tm * n_out_pad * act_bytes
                   + 2 * tm * max_width * 4)
    # Floor of 32 MiB (> v5e's 16 MiB scoped default); cap at v7x's 64 MiB
    # physical.  Configs needing more must K/N-tile the largest layer.
    vmem_limit = int(min(max(2 * vmem_needed, 32 * (1 << 20)), 64 * (1 << 20)))

    dims_seq = [K0] + padded_widths
    flops = sum(2 * B * dims_seq[i] * dims_seq[i + 1] for i in range(n_layers))
    bytes_accessed = x.size * act_bytes + weight_bytes + B * n_out_pad * act_bytes

    out = pl.pallas_call(
        _post_layers_kernel,
        out_shape=jax.ShapeDtypeStruct((B, n_out_pad), x.dtype),
        grid=grid,
        in_specs=in_specs,
        out_specs=out_specs,
        compiler_params=pltpu.CompilerParams(
            dimension_semantics=("parallel",),
            vmem_limit_bytes=vmem_limit,
        ),
        cost_estimate=pl.CostEstimate(
            flops=flops, transcendentals=0, bytes_accessed=bytes_accessed),
    )(*flat_inputs)

    if n_out is not None and n_out != n_out_pad:
        out = out[:, :n_out]
    return out


def init_raw_params(key, dimensions, num_layers, ratio):
    """Deterministic synthetic nn.Linear-style params: list of (W [out,in], b [out]) f32."""
    raw = []
    d_in = dimensions
    for _ in range(num_layers):
        d_out = d_in * ratio
        key, kw, kb = jax.random.split(key, 3)
        bound = 1.0 / jnp.sqrt(d_in)
        w = jax.random.uniform(kw, (d_out, d_in), jnp.float32, -bound, bound)
        b = jax.random.uniform(kb, (d_out,), jnp.float32, -bound, bound)
        raw.append((w, b))
        d_in = d_out
    return raw


def prepare_params(raw_params, weight_dtype=jnp.bfloat16):
    """One-time prep: transpose to [in, out], zero-pad every output width (and the
    next layer's matching input rows) up to a multiple of 128 lanes, cast weights
    to `weight_dtype`, keep biases in f32 as a [1, out_pad] row.  Zero-padding is
    mathematically exact.  Returns (kernel_params, logical_out_width)."""
    params = []
    pad_in = raw_params[0][0].shape[1]          # x itself is not padded
    for (w, b) in raw_params:
        d_out, d_in = w.shape
        pad_out = _round_up(d_out, _LANE)
        w_t = jnp.zeros((pad_in, pad_out), jnp.float32)
        w_t = w_t.at[:d_in, :d_out].set(w.T)
        b_p = jnp.zeros((1, pad_out), jnp.float32)
        b_p = b_p.at[:, :d_out].set(b.reshape(1, d_out))
        params.append((w_t.astype(weight_dtype), b_p))
        pad_in = pad_out
    return params, raw_params[-1][0].shape[0]


def post_layers_reference(x, params):
    """Pure-JAX reference using the same bf16-weight / f32-accumulate recipe."""
    out = x
    for w_t, b in params:
        out = jnp.dot(out.astype(w_t.dtype), w_t,
                      preferred_element_type=jnp.float32) + b
    return out.astype(x.dtype)


if __name__ == "__main__":
    dimensions, num_layers, ratio = 32, 2, 2    # layer widths: 32 -> 64 -> 128
    batch = 20                                  # not a multiple of 8: ragged-tile check

    key = jax.random.PRNGKey(0)
    key, kx = jax.random.split(key)
    x = jax.random.normal(kx, (batch, dimensions), jnp.float32)

    raw = init_raw_params(key, dimensions, num_layers, ratio)
    params, n_out = prepare_params(raw)

    # Auto-sized tile (whole batch in a single grid step at this toy size).
    y = post_layers_forward(x, params, n_out)
    y = jax.block_until_ready(y)

    # Forced small tile: multi-step grid with a ragged last tile (tm=8, B=20 -> 3 steps).
    y2 = post_layers_forward(x, params, n_out, tm=8)
    y2 = jax.block_until_ready(y2)

    y_ref = post_layers_reference(x, params)[:, :n_out]
    assert y.shape == (batch, n_out)
    assert jnp.allclose(y, y_ref, atol=1e-3, rtol=1e-3), float(jnp.abs(y - y_ref).max())
    assert jnp.allclose(y2, y_ref, atol=1e-3, rtol=1e-3), float(jnp.abs(y2 - y_ref).max())

    print("KERNEL_OK")
</pallas_src>

<mosaic_0001>
module attributes {stable_mosaic.version = 11 : i64} {
  func.func @_post_layers_kernel(%arg0: i32, %arg1: memref<20x32xf32, #tpu.memory_space<vmem>>, %arg2: memref<32x128xbf16, #tpu.memory_space<vmem>>, %arg3: memref<1x128xf32, #tpu.memory_space<vmem>>, %arg4: memref<128x128xbf16, #tpu.memory_space<vmem>>, %arg5: memref<1x128xf32, #tpu.memory_space<vmem>>, %arg6: memref<20x128xf32, #tpu.memory_space<vmem>>) attributes {dimension_semantics = [#tpu.dimension_semantics<parallel>], iteration_bounds = array<i64: 1>, scalar_prefetch = 0 : i64, scratch_operands = 0 : i64, tpu.core_type = #tpu.core_type<tc>, window_params = [{transform_indices = @transform_0, window_bounds = array<i64: 20, 32>}, {pipeline_mode = #tpu.pipeline_mode<synchronous>, transform_indices = @transform_1, window_bounds = array<i64: 32, 128>}, {pipeline_mode = #tpu.pipeline_mode<synchronous>, transform_indices = @transform_2, window_bounds = array<i64: 1, 128>}, {pipeline_mode = #tpu.pipeline_mode<synchronous>, transform_indices = @transform_3, window_bounds = array<i64: 128, 128>}, {pipeline_mode = #tpu.pipeline_mode<synchronous>, transform_indices = @transform_4, window_bounds = array<i64: 1, 128>}, {transform_indices = @transform_5, window_bounds = array<i64: 20, 128>}]} {
    %c0 = arith.constant 0 : index
    %c0_0 = arith.constant 0 : index
    %0 = vector.load %arg1[%c0, %c0_0] : memref<20x32xf32, #tpu.memory_space<vmem>>, vector<20x32xf32>
    %c0_1 = arith.constant 0 : index
    %c0_2 = arith.constant 0 : index
    %1 = vector.load %arg2[%c0_1, %c0_2] : memref<32x128xbf16, #tpu.memory_space<vmem>>, vector<32x128xbf16>
    %c0_3 = arith.constant 0 : index
    %c0_4 = arith.constant 0 : index
    %2 = vector.load %arg3[%c0_3, %c0_4] : memref<1x128xf32, #tpu.memory_space<vmem>>, vector<1x128xf32>
    %3 = arith.truncf %0 : vector<20x32xf32> to vector<20x32xbf16>
    %cst = arith.constant dense<0.000000e+00> : vector<20x128xf32>
    %4 = tpu.matmul %3, %1, %cst {dimension_numbers = #tpu.dot_dimension_numbers<[1], [0], [0], [1], [0, 0, 1, 1], [], []>} : vector<20x32xbf16>, vector<32x128xbf16>, vector<20x128xf32> -> vector<20x128xf32>
    %5 = vector.broadcast %2 : vector<1x128xf32> to vector<20x128xf32>
    %6 = arith.addf %4, %5 : vector<20x128xf32>
    %c0_5 = arith.constant 0 : index
    %c0_6 = arith.constant 0 : index
    %7 = vector.load %arg4[%c0_5, %c0_6] : memref<128x128xbf16, #tpu.memory_space<vmem>>, vector<128x128xbf16>
    %c0_7 = arith.constant 0 : index
    %c0_8 = arith.constant 0 : index
    %8 = vector.load %arg5[%c0_7, %c0_8] : memref<1x128xf32, #tpu.memory_space<vmem>>, vector<1x128xf32>
    %9 = arith.truncf %6 : vector<20x128xf32> to vector<20x128xbf16>
    %cst_9 = arith.constant dense<0.000000e+00> : vector<20x128xf32>
    %10 = tpu.matmul %9, %7, %cst_9 {dimension_numbers = #tpu.dot_dimension_numbers<[1], [0], [0], [1], [0, 0, 1, 1], [], []>} : vector<20x128xbf16>, vector<128x128xbf16>, vector<20x128xf32> -> vector<20x128xf32>
    %11 = vector.broadcast %8 : vector<1x128xf32> to vector<20x128xf32>
    %12 = arith.addf %10, %11 : vector<20x128xf32>
    %c0_10 = arith.constant 0 : index
    %c0_11 = arith.constant 0 : index
    %13 = vector.load %arg6[%c0_10, %c0_11] : memref<20x128xf32, #tpu.memory_space<vmem>>, vector<20x128xf32>
    tpu.vector_store %arg6[%c0_10, %c0_11], %12 {strides = array<i32>} : memref<20x128xf32, #tpu.memory_space<vmem>>, vector<20x128xf32>,
    return
  }
  func.func @transform_0(%arg0: i32) -> (i32, i32) {
    %c0_i32 = arith.constant 0 : i32
    %c0_i32_0 = arith.constant 0 : i32
    return %arg0, %c0_i32 : i32, i32
  }
  func.func @transform_1(%arg0: i32) -> (i32, i32) {
    %c0_i32 = arith.constant 0 : i32
    %c0_i32_0 = arith.constant 0 : i32
    %c0_i32_1 = arith.constant 0 : i32
    return %c0_i32, %c0_i32_0 : i32, i32
  }
  func.func @transform_2(%arg0: i32) -> (i32, i32) {
    %c0_i32 = arith.constant 0 : i32
    %c0_i32_0 = arith.constant 0 : i32
    %c0_i32_1 = arith.constant 0 : i32
    return %c0_i32, %c0_i32_0 : i32, i32
  }
  func.func @transform_3(%arg0: i32) -> (i32, i32) {
    %c0_i32 = arith.constant 0 : i32
    %c0_i32_0 = arith.constant 0 : i32
    %c0_i32_1 = arith.constant 0 : i32
    return %c0_i32, %c0_i32_0 : i32, i32
  }
  func.func @transform_4(%arg0: i32) -> (i32, i32) {
    %c0_i32 = arith.constant 0 : i32
    %c0_i32_0 = arith.constant 0 : i32
    %c0_i32_1 = arith.constant 0 : i32
    return %c0_i32, %c0_i32_0 : i32, i32
  }
  func.func @transform_5(%arg0: i32) -> (i32, i32) {
    %c0_i32 = arith.constant 0 : i32
    %c0_i32_0 = arith.constant 0 : i32
    return %arg0, %c0_i32 : i32, i32
  }
}

</mosaic_0001>

<llo_original>
// kernel: tpu_custom_call.1
$region0: #{tpu_custom_call.1}
  #allocation0 [shape = 'u32[]', space=smem, size = 0x4, offset = 0x4, fixed_abs, tag = 'smem constant byte address 0x4 - core index']
  #allocation1 [shape = 'u32[144,128]{1,0:T(1,128)}', space=vmem, size = 0x12000, scoped, tag = 'internal scratch']
  %s0 = inlined_call_operand.hbm [shape: f32[20,32], index: 0, kind: input, shape index: {}]
  %s1 = inlined_call_operand.hbm [shape: bf16[32,128], index: 1, kind: input, shape index: {}]
  %s2 = inlined_call_operand.vmem [shape: f32[1,128], index: 2, kind: input, shape index: {}]
  %s3 = inlined_call_operand.hbm [shape: bf16[128,128], index: 3, kind: input, shape index: {}]
  %s4 = inlined_call_operand.vmem [shape: f32[1,128], index: 4, kind: input, shape index: {}]
  %s5 = inlined_call_operand.hbm [shape: f32[20,128], index: 5, kind: output, shape index: {}]
  %s6 = sld [smem:[#allocation0]]
  $region42: #{tpu_custom_call.1} parent=0
    _
  %s8 = ssub.s32 1, %s6
  %s9 = scalar_select 0, %s8, %s6
  $region1: #{tpu_custom_call.1} parent=0
    #allocation2 [shape = 'u8[12288]{0}', space=vmem, size = 0x3000, scoped, tag = 'input window, operand 0, single buffered']
    #allocation3 [shape = 's32[1]{0}', space=sflag, size = 0x4, scoped, tag = 'scoped memory for tpu_custom_call.1']
    #allocation4 [shape = 's32[1]{0}', space=sflag, size = 0x4, scoped, tag = 'scoped memory for tpu_custom_call.1']
    #allocation5 [shape = 'u8[8192]{0}', space=vmem, size = 0x2000, scoped, tag = 'input window, operand 1, single buffered']
    #allocation6 [shape = 's32[1]{0}', space=sflag, size = 0x4, scoped, tag = 'scoped memory for tpu_custom_call.1']
    #allocation7 [shape = 'u8[32768]{0}', space=vmem, size = 0x8000, scoped, tag = 'input window, operand 3, single buffered']
    #allocation8 [shape = 'u8[12288]{0}', space=vmem, size = 0x3000, scoped, tag = 'output window, operand 0, single buffered']
    %10 = vsyncpa [#allocation3], 0
    %11 = vsyncpa [#allocation6], 0
    %12 = vsyncpa [#allocation4], 0
    // Predicated region
    $region2: #{tpu_custom_call.1} parent=1 // pred_check
      _
    $region3: #{tpu_custom_call.1} parent=1 // pred_check_branch
      %14 = sbr.rel (0) target = $region5
    $region4: #{tpu_custom_call.1} parent=1 // pred_region
      %s16 = ssub.s32 384, 384
      %17 = vsyncadd [#allocation3], %s16
      %s18 = sshll.u32 [#allocation2], 4
      %s19 = int_to_ptr.vmem [resolvable:$true] %s18
      %24 = dma.hbm_to_vmem [thread:$0]  %s0, 384, %s19, [#allocation3], 128, 128, 8
    $region5: #{tpu_custom_call.1} parent=1 // pred_fallthru
      _
    // Predicated region
    $region6: #{tpu_custom_call.1} parent=1 // pred_check
      _
    $region7: #{tpu_custom_call.1} parent=1 // pred_check_branch
      %26 = sbr.rel (0) target = $region9
    $region8: #{tpu_custom_call.1} parent=1 // pred_region
      %s28 = ssub.s32 256, 256
      %29 = vsyncadd [#allocation6], %s28
      %s30 = sshll.u32 [#allocation5], 4
      %s31 = int_to_ptr.vmem [resolvable:$true] %s30
      %36 = dma.hbm_to_vmem [thread:$0]  %s1, 256, %s31, [#allocation6], 64, 64, 4
    $region9: #{tpu_custom_call.1} parent=1 // pred_fallthru
      _
    // Predicated region
    $region10: #{tpu_custom_call.1} parent=1 // pred_check
      _
    $region11: #{tpu_custom_call.1} parent=1 // pred_check_branch
      %38 = sbr.rel (0) target = $region13
    $region12: #{tpu_custom_call.1} parent=1 // pred_region
      _
    $region13: #{tpu_custom_call.1} parent=1 // pred_fallthru
      _
    // Predicated region
    $region14: #{tpu_custom_call.1} parent=1 // pred_check
      _
    $region15: #{tpu_custom_call.1} parent=1 // pred_check_branch
      %40 = sbr.rel (0) target = $region17
    $region16: #{tpu_custom_call.1} parent=1 // pred_region
      %s42 = ssub.s32 1024, 1024
      %43 = vsyncadd [#allocation6], %s42
      %s44 = sshll.u32 [#allocation7], 4
      %s45 = int_to_ptr.vmem [resolvable:$true] %s44
      %50 = dma.hbm_to_vmem [thread:$0]  %s3, 1024, %s45, [#allocation6], 64, 64, 4
    $region17: #{tpu_custom_call.1} parent=1 // pred_fallthru
      _
    // Predicated region
    $region18: #{tpu_custom_call.1} parent=1 // pred_check
      _
    $region19: #{tpu_custom_call.1} parent=1 // pred_check_branch
      %52 = sbr.rel (0) target = $region21
    $region20: #{tpu_custom_call.1} parent=1 // pred_region
      _
    $region21: #{tpu_custom_call.1} parent=1 // pred_fallthru
      _
    // Predicated region
    $region22: #{tpu_custom_call.1} parent=1 // pred_check
      _
    $region23: #{tpu_custom_call.1} parent=1 // pred_check_branch
      %54 = sbr.rel (0) target = $region25
    $region24: #{tpu_custom_call.1} parent=1 // pred_region
      %55 = dma.done [#allocation3], 384
    $region25: #{tpu_custom_call.1} parent=1 // pred_fallthru
      _
    // Predicated region
    $region26: #{tpu_custom_call.1} parent=1 // pred_check
      _
    $region27: #{tpu_custom_call.1} parent=1 // pred_check_branch
      %57 = sbr.rel (0) target = $region29
    $region28: #{tpu_custom_call.1} parent=1 // pred_region
      %58 = dma.done [#allocation6], 256
    $region29: #{tpu_custom_call.1} parent=1 // pred_fallthru
      _
    // Predicated region
    $region30: #{tpu_custom_call.1} parent=1 // pred_check
      _
    $region31: #{tpu_custom_call.1} parent=1 // pred_check_branch
      %60 = sbr.rel (0) target = $region33
    $region32: #{tpu_custom_call.1} parent=1 // pred_region
      %61 = dma.done [#allocation6], 1024
    $region33: #{tpu_custom_call.1} parent=1 // pred_fallthru
      _
    %v63 = vld [vmem:[#allocation2] sm:$0xff]
    %v64 = vld [vmem:[#allocation2 + $0x8] sm:$0xff]
    %v65 = vld [vmem:[#allocation2 + $0x10] sm:$0xf]
    %v66 = vld [vmem:[#allocation5] sm:$0xf]
    %v67 = vld [vmem:[#allocation5 + $0x4] sm:$0xf]
    %v68 = vld [vmem:[#allocation5 + $0x8] sm:$0xf]
    %v69 = vld [vmem:[#allocation5 + $0xc] sm:$0xf]
    %v70 = vld [vmem:[%s2] sm:$0x1]
    %v71 = vpack.c.bf16 %v64, %v63
    %v72 = vpack.c.bf16 %v65, %v65
    %v74 = vlaneseq
    %v75 = vshrl.u32 %v74, 7
    %v76 = vsub.s32 0, %v75
    %v77 = vrot.slane %v70, %v76
    %v83 = vunpack.c.l.b16 %v66
    %v84 = vunpack.c.l.b16 %v67
    %v85 = vunpack.c.l.b16 %v68
    %v86 = vunpack.c.l.b16 %v69
    %v87 = vpack.c.b16 %v84, %v83
    %v88 = vpack.c.b16 %v86, %v85
    %vm91 = vcmask 261120
    %v93 = vsel %vm91, %v71, 0
    %v96 = vsel %vm91, %v72, 0
    %98 = vmatprep.subr.bf16.mxu0 0
    %99 = vmatpush1.bf16.msra.mxu0 %v87
    %100 = vmatprep.subr.bf16.mxu0 0
    %101 = vmatpush1.bf16.msra.mxu0 %v88
    %102 = vmatprep.subr.bf16.mxu0 0
    %103 = vmatpush1.bf16.msra.mxu0 0
    %104 = vmatprep.subr.bf16.mxu0 0
    %105 = vmatpush1.bf16.msra.mxu0 0
    %106 = vmatprep.subr.bf16.mxu0 0
    %107 = vmatpush1.bf16.msra.mxu0 0
    %108 = vmatprep.subr.bf16.mxu0 0
    %109 = vmatpush1.bf16.msra.mxu0 0
    %110 = vmatprep.subr.bf16.mxu0 0
    %111 = vmatpush1.bf16.msra.mxu0 0
    %112 = vmatprep.subr.bf16.mxu0 0
    %113 = vmatpush1.bf16.msra.mxu0 0
    %114 = vmatprep.subr.bf16.mxu0 0
    %115 = vmatpush1.bf16.msra.mxu0 0
    %116 = vmatprep.subr.bf16.mxu0 0
    %117 = vmatpush1.bf16.msra.mxu0 0
    %118 = vmatprep.subr.bf16.mxu0 0
    %119 = vmatpush1.bf16.msra.mxu0 0
    %120 = vmatprep.subr.bf16.mxu0 0
    %121 = vmatpush1.bf16.msra.mxu0 0
    %122 = vmatprep.subr.bf16.mxu0 0
    %123 = vmatpush1.bf16.msra.mxu0 0
    %124 = vmatprep.subr.bf16.mxu0 0
    %125 = vmatpush1.bf16.msra.mxu0 0
    %126 = vmatprep.subr.bf16.mxu0 0
    %127 = vmatpush1.bf16.msra.mxu0 0
    %128 = vmatprep.subr.bf16.mxu0 0
    %129 = vmatpush1.bf16.msra.mxu0 0
    %130 = vmatprep.mubr.bf16.mxu0 0
    %131 = vmatmul.mubr.bf16.gmra.mrb[0].mxu0 %v93
    %v132 = vpop.f32.mrb[0].mxu0
    %v133 = vadd.f32 %v77, %v132
    %v134 = vpop.f32.mrb[0].mxu0
    %v135 = vpop.f32.mrb[0].mxu0
    %v136 = vadd.f32 %v77, %v135
    %v137 = vpop.f32.mrb[0].mxu0
    %138 = vmatprep.mubr.bf16.mxu0 0
    %139 = vmatmul.mubr.bf16.gmra.mrb[0].mxu0 %v96
    %v140 = vpop.f32.mrb[0].mxu0
    %v141 = vadd.f32 %v77, %v140
    %v142 = vpop.f32.mrb[0].mxu0
    %v143 = vpop.f32.mrb[0].mxu0
    %v144 = vpop.f32.mrb[0].mxu0
    %145 = vdwg.mxu0
    %v146 = vld [vmem:[#allocation7] sm:$0xf]
    %v147 = vld [vmem:[#allocation7 + $0x4] sm:$0xf]
    %v148 = vld [vmem:[#allocation7 + $0x8] sm:$0xf]
    %v149 = vld [vmem:[#allocation7 + $0xc] sm:$0xf]
    %v150 = vld [vmem:[#allocation7 + $0x10] sm:$0xf]
    %v151 = vld [vmem:[#allocation7 + $0x14] sm:$0xf]
    %v152 = vld [vmem:[#allocation7 + $0x18] sm:$0xf]
    %v153 = vld [vmem:[#allocation7 + $0x1c] sm:$0xf]
    %v154 = vld [vmem:[#allocation7 + $0x20] sm:$0xf]
    %v155 = vld [vmem:[#allocation7 + $0x24] sm:$0xf]
    %v156 = vld [vmem:[#allocation7 + $0x28] sm:$0xf]
    %v157 = vld [vmem:[#allocation7 + $0x2c] sm:$0xf]
    %v158 = vld [vmem:[#allocation7 + $0x30] sm:$0xf]
    %v159 = vld [vmem:[#allocation7 + $0x34] sm:$0xf]
    %v160 = vld [vmem:[#allocation7 + $0x38] sm:$0xf]
    %v161 = vld [vmem:[#allocation7 + $0x3c] sm:$0xf]
    %v162 = vld [vmem:[%s4] sm:$0x1]
    %v163 = vpack.c.bf16 %v136, %v133
    %v164 = vpack.c.bf16 %v141, %v141
    %v166 = vlaneseq
    %v167 = vshrl.u32 %v166, 7
    %v168 = vsub.s32 0, %v167
    %v169 = vrot.slane %v162, %v168
    %v187 = vunpack.c.l.b16 %v146
    %v188 = vunpack.c.l.b16 %v147
    %v189 = vunpack.c.l.b16 %v148
    %v190 = vunpack.c.l.b16 %v149
    %v191 = vunpack.c.l.b16 %v150
    %v192 = vunpack.c.l.b16 %v151
    %v193 = vunpack.c.l.b16 %v152
    %v194 = vunpack.c.l.b16 %v153
    %v195 = vunpack.c.l.b16 %v154
    %v196 = vunpack.c.l.b16 %v155
    %v197 = vunpack.c.l.b16 %v156
    %v198 = vunpack.c.l.b16 %v157
    %v199 = vunpack.c.l.b16 %v158
    %v200 = vunpack.c.l.b16 %v159
    %v201 = vunpack.c.l.b16 %v160
    %v202 = vunpack.c.l.b16 %v161
    %v203 = vpack.c.b16 %v188, %v187
    %v204 = vpack.c.b16 %v190, %v189
    %v205 = vpack.c.b16 %v192, %v191
    %v206 = vpack.c.b16 %v194, %v193
    %v207 = vpack.c.b16 %v196, %v195
    %v208 = vpack.c.b16 %v198, %v197
    %v209 = vpack.c.b16 %v200, %v199
    %v210 = vpack.c.b16 %v202, %v201
    %219 = vmatprep.subr.bf16.mxu0 0
    %220 = vmatpush1.bf16.msra.mxu0 %v203
    %221 = vmatprep.subr.bf16.mxu0 0
    %222 = vmatpush1.bf16.msra.mxu0 %v204
    %223 = vmatprep.subr.bf16.mxu0 0
    %224 = vmatpush1.bf16.msra.mxu0 %v205
    %225 = vmatprep.subr.bf16.mxu0 0
    %226 = vmatpush1.bf16.msra.mxu0 %v206
    %227 = vmatprep.subr.bf16.mxu0 0
    %228 = vmatpush1.bf16.msra.mxu0 %v207
    %229 = vmatprep.subr.bf16.mxu0 0
    %230 = vmatpush1.bf16.msra.mxu0 %v208
    %231 = vmatprep.subr.bf16.mxu0 0
    %232 = vmatpush1.bf16.msra.mxu0 %v209
    %233 = vmatprep.subr.bf16.mxu0 0
    %234 = vmatpush1.bf16.msra.mxu0 %v210
    %235 = vmatprep.subr.bf16.mxu0 0
    %236 = vmatpush1.bf16.msra.mxu0 0
    %237 = vmatprep.subr.bf16.mxu0 0
    %238 = vmatpush1.bf16.msra.mxu0 0
    %239 = vmatprep.subr.bf16.mxu0 0
    %240 = vmatpush1.bf16.msra.mxu0 0
    %241 = vmatprep.subr.bf16.mxu0 0
    %242 = vmatpush1.bf16.msra.mxu0 0
    %243 = vmatprep.subr.bf16.mxu0 0
    %244 = vmatpush1.bf16.msra.mxu0 0
    %245 = vmatprep.subr.bf16.mxu0 0
    %246 = vmatpush1.bf16.msra.mxu0 0
    %247 = vmatprep.subr.bf16.mxu0 0
    %248 = vmatpush1.bf16.msra.mxu0 0
    %249 = vmatprep.subr.bf16.mxu0 0
    %250 = vmatpush1.bf16.msra.mxu0 0
    %251 = vmatprep.mubr.bf16.mxu0 0
    %252 = vmatmul.mubr.bf16.gmra.mrb[0].mxu0 %v163
    %v253 = vpop.f32.mrb[0].mxu0
    %v254 = vadd.f32 %v169, %v253
    %v255 = vpop.f32.mrb[0].mxu0
    %v256 = vpop.f32.mrb[0].mxu0
    %v257 = vadd.f32 %v169, %v256
    %v258 = vpop.f32.mrb[0].mxu0
    %259 = vmatprep.mubr.bf16.mxu0 0
    %260 = vmatmul.mubr.bf16.gmra.mrb[0].mxu0 %v164
    %v261 = vpop.f32.mrb[0].mxu0
    %v262 = vadd.f32 %v169, %v261
    %v263 = vpop.f32.mrb[0].mxu0
    %v264 = vpop.f32.mrb[0].mxu0
    %v265 = vpop.f32.mrb[0].mxu0
    %266 = vdwg.mxu0
    %267 = vst [vmem:[#allocation8] sm:$0xff] %v254
    %268 = vst [vmem:[#allocation8 + $0x8] sm:$0xff] %v257
    %269 = vst [vmem:[#allocation8 + $0x10] sm:$0xf] %v262
    // Predicated region
    $region34: #{tpu_custom_call.1} parent=1 // pred_check
      _
    $region35: #{tpu_custom_call.1} parent=1 // pred_check_branch
      %271 = sbr.rel (0) target = $region37
    $region36: #{tpu_custom_call.1} parent=1 // pred_region
      %s273 = ssub.s32 384, 384
      %274 = vsyncadd [#allocation4], %s273
      %s275 = sshll.u32 [#allocation8], 4
      %s276 = int_to_ptr.vmem [resolvable:$true] %s275
      %281 = dma.vmem_to_hbm [thread:$0]  %s276, 384, %s5, [#allocation4], 128, 128, 8
    $region37: #{tpu_custom_call.1} parent=1 // pred_fallthru
      _
    // Predicated region
    $region38: #{tpu_custom_call.1} parent=1 // pred_check
      _
    $region39: #{tpu_custom_call.1} parent=1 // pred_check_branch
      %283 = sbr.rel (0) target = $region41
    $region40: #{tpu_custom_call.1} parent=1 // pred_region
      %284 = dma.done [#allocation4], 384
    $region41: #{tpu_custom_call.1} parent=1 // pred_fallthru
      _
    %285 = vsyncpa [#allocation3], 1
    %286 = vsyncpa [#allocation6], 1
    %287 = vsyncpa [#allocation4], 1

</llo_original>
